<compile_context>
chip_gen: v7x
topology: tpu7x:2x2x1
jax: 0.10.0
libtpu: 0.0.40
codegen_flags: <defaults>
</compile_context>

<pallas_src>
import functools

import jax
import jax.numpy as jnp
from jax.experimental import pallas as pl
from jax.experimental.pallas import tpu as pltpu


_TARGET_BLOCKS = 8   # aim for >= this many channel grid steps (pipelining + both v7x TCs)


# ---------------------------------------------------------------------------
# Helpers
# ---------------------------------------------------------------------------

def _round_up(v: int, m: int) -> int:
    return (v + m - 1) // m * m


def _sublane_tile(dtype) -> int:
    # f32 -> 8, bf16 -> 16, int8/fp8 -> 32 (packed sublane tile).
    return max(8, 32 // max(1, jnp.dtype(dtype).itemsize))


def _vmem_budgets():
    """Generation-aware (scoped VMEM limit, per-block byte budget)."""
    vmem = 64 * 1024 * 1024            # conservative default if query fails
    try:
        vmem = int(pltpu.get_tpu_info().vmem_capacity_bytes)
    except Exception:
        pass
    if vmem <= 64 * 1024 * 1024:
        # v7x: 64 MiB per TensorCore -> leave headroom for compiler scratch.
        return 36 * 1024 * 1024, 14 * 1024 * 1024
    # v5e / v6e: 128 MiB parts -> large tiles approach the HBM roofline.
    return 100 * 1024 * 1024, 48 * 1024 * 1024


def _bytes_per_elem(in_dtype, out_dtype) -> int:
    # Double-buffered input + output DMA tiles plus ~2 f32 compute temps.
    return (2 * jnp.dtype(in_dtype).itemsize
            + 2 * jnp.dtype(out_dtype).itemsize + 8)


def _choose_single_pass_tc(B, C, S, per_elem, sub, budget):
    """Channel tile for the single-pass kernel, or None -> two-pass fallback."""
    per_ch = B * S * per_elem
    if per_ch * sub > budget:
        return None                                # one sublane row won't fit
    fit_tc = (budget // per_ch) // sub * sub       # largest aligned tile fitting budget
    want_tc = _round_up(pl.cdiv(C, _TARGET_BLOCKS), sub)  # keep ~8 grid steps
    tc = max(sub, min(fit_tc, want_tc))
    if tc >= C:
        return C                                   # tiny C: one block (unavoidable)
    # Snap to an exact divisor of C when one exists (no ragged tail block,
    # no wrapper padding / slicing of x).
    for d in range(tc, sub - 1, -sub):
        if C % d == 0:
            return d
    return tc                                      # ragged tail handled by partial blocks


def _choose_lane_tc(B, C, per_elem, budget):
    """Lane (channel) tile for the 2-D path."""
    per_col = B * per_elem
    fit = max(128, (budget // max(per_col, 1)) // 128 * 128)
    want = _round_up(pl.cdiv(C, _TARGET_BLOCKS), 128)
    tc = max(128, min(fit, want))
    if tc >= C:
        return C
    for d in range(tc, 127, -128):
        if C % d == 0:
            return d
    return tc


# ---------------------------------------------------------------------------
# Kernels
# ---------------------------------------------------------------------------

def _bn_single_pass_kernel(x_ref, scale_ref, shift_ref, o_ref, *, eps, inv_n):
    """One visit per channel block: stats + normalize + folded affine.

    x_ref:     (B, tc, S)  x.dtype
    scale_ref: (1, tc, 1)  f32
    shift_ref: (1, tc, 1)  f32
    o_ref:     (B, tc, S)  x.dtype
    """
    x = x_ref[...].astype(jnp.float32)
    mean = jnp.sum(jnp.sum(x, axis=2, keepdims=True),
                   axis=0, keepdims=True) * inv_n              # (1, tc, 1)
    xc = x - mean
    var = jnp.sum(jnp.sum(xc * xc, axis=2, keepdims=True),
                  axis=0, keepdims=True) * inv_n               # centered: no cancellation
    inv_std = jax.lax.rsqrt(var + eps)
    a = scale_ref[...] * inv_std                               # fold affine: o = a*x + b
    b = shift_ref[...] - mean * a
    # Re-read x for the apply step: keeps the f32 temp a streaming window
    # instead of holding the whole block live across the reduction.
    o_ref[...] = (x_ref[...].astype(jnp.float32) * a + b).astype(o_ref.dtype)


def _bn_lane_kernel(x_ref, scale_ref, shift_ref, o_ref, *, eps, inv_n):
    """2-D (B, C) inputs: channels stay on the lane axis (lane-dense I/O).

    x_ref: (B, tc); scale_ref/shift_ref: (1, tc) f32; o_ref: (B, tc).
    """
    x = x_ref[...].astype(jnp.float32)
    mean = jnp.sum(x, axis=0, keepdims=True) * inv_n
    xc = x - mean
    var = jnp.sum(xc * xc, axis=0, keepdims=True) * inv_n
    inv_std = jax.lax.rsqrt(var + eps)
    a = scale_ref[...] * inv_std
    b = shift_ref[...] - mean * a
    o_ref[...] = (x_ref[...].astype(jnp.float32) * a + b).astype(o_ref.dtype)


def _bn_stats_kernel(x_ref, sum_ref, sq_ref, *, S, tn):
    """Fallback pass 1: lane-dense per-channel sum / sum-of-squares.

    x_ref: (B, tc, tn); sum_ref/sq_ref: (1, tc, 128) resident accumulators
    across the S grid axis (final 128-lane reduce is done once in the wrapper).
    """
    n = pl.program_id(1)

    @pl.when(n == 0)
    def _init():
        sum_ref[...] = jnp.zeros_like(sum_ref)
        sq_ref[...] = jnp.zeros_like(sq_ref)

    x = x_ref[...].astype(jnp.float32)
    if S % tn != 0:
        # Zero the out-of-range spatial columns of the (partial) last block.
        col = n * tn + jax.lax.broadcasted_iota(jnp.int32, x.shape, 2)
        x = jnp.where(col < S, x, 0.0)

    s = jnp.zeros(sum_ref.shape, jnp.float32)
    q = jnp.zeros(sq_ref.shape, jnp.float32)
    for k in range(tn // 128):                       # VPU adds; no XLU in the inner loop
        xk = x[:, :, k * 128:(k + 1) * 128]          # (B, tc, 128)
        s = s + jnp.sum(xk, axis=0, keepdims=True)
        q = q + jnp.sum(xk * xk, axis=0, keepdims=True)
    sum_ref[...] += s
    sq_ref[...] += q


def _bn_apply_kernel(x_ref, a_ref, b_ref, o_ref, *, tc):
    """Fallback pass 2: o = a*x + b. a/b are resident full-channel arrays."""
    off = pl.multiple_of(pl.program_id(0) * tc, tc)
    a = a_ref[:, pl.ds(off, tc), :]                  # (1, tc, 1)
    b = b_ref[:, pl.ds(off, tc), :]
    o_ref[...] = (x_ref[...].astype(jnp.float32) * a + b).astype(o_ref.dtype)


# ---------------------------------------------------------------------------
# Wrapper
# ---------------------------------------------------------------------------

def batch_norm(x: jax.Array,
               scale: jax.Array,
               shift: jax.Array,
               *,
               eps: float = 1e-5) -> jax.Array:
    """Batch-norm forward (training statistics) for (B,C), (B,C,L), (B,C,H,W)."""
    x_shape = x.shape
    assert x.ndim >= 2
    B, C = x_shape[0], x_shape[1]
    assert scale.shape == (C,) and shift.shape == (C,)

    vmem_limit, budget = _vmem_budgets()
    per_elem = _bytes_per_elem(x.dtype, x.dtype)
    scale_f = scale.astype(jnp.float32)
    shift_f = shift.astype(jnp.float32)

    # ------------- 2-D (B, C): keep channels on the lane axis ---------------
    if x.ndim == 2 and B * 128 * per_elem <= budget:
        tc = _choose_lane_tc(B, C, per_elem, budget)
        return pl.pallas_call(
            functools.partial(_bn_lane_kernel, eps=eps, inv_n=1.0 / B),
            out_shape=jax.ShapeDtypeStruct((B, C), x.dtype),
            grid_spec=pltpu.PrefetchScalarGridSpec(
                num_scalar_prefetch=0,
                grid=(pl.cdiv(C, tc),),
                in_specs=[
                    pl.BlockSpec((B, tc), lambda c: (0, c)),
                    pl.BlockSpec((1, tc), lambda c: (0, c)),
                    pl.BlockSpec((1, tc), lambda c: (0, c)),
                ],
                out_specs=pl.BlockSpec((B, tc), lambda c: (0, c))),
            compiler_params=pltpu.CompilerParams(
                dimension_semantics=("parallel",),
                vmem_limit_bytes=vmem_limit),
        )(x, scale_f.reshape(1, C), shift_f.reshape(1, C))

    # ------------- General (B, C, S): free reshape, no transpose ------------
    x3 = x.reshape(B, C, -1)
    S = x3.shape[-1]
    N = B * S
    inv_n = 1.0 / N
    sub = _sublane_tile(x.dtype)

    tc = _choose_single_pass_tc(B, C, S, per_elem, sub, budget)

    if tc is not None:
        # ----- Single-pass path: 1 HBM read + 1 HBM write of x --------------
        out = pl.pallas_call(
            functools.partial(_bn_single_pass_kernel, eps=eps, inv_n=inv_n),
            out_shape=jax.ShapeDtypeStruct((B, C, S), x.dtype),
            grid_spec=pltpu.PrefetchScalarGridSpec(
                num_scalar_prefetch=0,
                grid=(pl.cdiv(C, tc),),
                in_specs=[
                    pl.BlockSpec((B, tc, S), lambda c: (0, c, 0)),
                    pl.BlockSpec((1, tc, 1), lambda c: (0, c, 0)),
                    pl.BlockSpec((1, tc, 1), lambda c: (0, c, 0)),
                ],
                out_specs=pl.BlockSpec((B, tc, S), lambda c: (0, c, 0))),
            compiler_params=pltpu.CompilerParams(
                dimension_semantics=("parallel",),
                vmem_limit_bytes=vmem_limit),
        )(x3, scale_f.reshape(1, C, 1), shift_f.reshape(1, C, 1))
        return out.reshape(x_shape)

    # ----- Two-pass fallback (a single channel row exceeds the budget) ------
    S128 = _round_up(S, 128)
    tn = (budget // max(B * sub * per_elem, 1)) // 128 * 128
    tn = int(min(S128, max(128, tn)))
    tc2 = (budget // max(B * tn * per_elem, 1)) // sub * sub
    tc2 = int(max(sub, min(tc2, _round_up(C, sub))))
    grid_c = pl.cdiv(C, tc2)
    grid_n = pl.cdiv(S, tn)

    # Pass 1: per-channel sums (lane-dense accumulators), no padding of x.
    sum128, sq128 = pl.pallas_call(
        functools.partial(_bn_stats_kernel, S=S, tn=tn),
        out_shape=(jax.ShapeDtypeStruct((1, C, 128), jnp.float32),
                   jax.ShapeDtypeStruct((1, C, 128), jnp.float32)),
        grid_spec=pltpu.PrefetchScalarGridSpec(
            num_scalar_prefetch=0,
            grid=(grid_c, grid_n),
            in_specs=[pl.BlockSpec((B, tc2, tn), lambda c, n: (0, c, n))],
            out_specs=(pl.BlockSpec((1, tc2, 128), lambda c, n: (0, c, 0)),
                       pl.BlockSpec((1, tc2, 128), lambda c, n: (0, c, 0)))),
        compiler_params=pltpu.CompilerParams(
            dimension_semantics=("parallel", "arbitrary"),
            vmem_limit_bytes=vmem_limit),
    )(x3)

    # Tiny per-channel math in plain JAX: final lane reduce + folded affine.
    sums = jnp.sum(sum128, axis=2, keepdims=True)              # (1, C, 1)
    sqs = jnp.sum(sq128, axis=2, keepdims=True)
    mean = sums * inv_n
    var = jnp.maximum(sqs * inv_n - mean * mean, 0.0)
    inv_std = jax.lax.rsqrt(var + eps)
    a = scale_f.reshape(1, C, 1) * inv_std
    b = shift_f.reshape(1, C, 1) - mean * a

    # Pad only the tiny coefficient arrays (never x) so the in-kernel dynamic
    # slice of the resident a/b block can never go out of bounds.
    Cp = _round_up(C, tc2)
    if Cp != C:
        a = jnp.pad(a, ((0, 0), (0, Cp - C), (0, 0)))
        b = jnp.pad(b, ((0, 0), (0, Cp - C), (0, 0)))

    # Pass 2: o = a*x + b. a/b resident (DMA'd once), x tiled, no padding.
    out = pl.pallas_call(
        functools.partial(_bn_apply_kernel, tc=tc2),
        out_shape=jax.ShapeDtypeStruct((B, C, S), x.dtype),
        grid_spec=pltpu.PrefetchScalarGridSpec(
            num_scalar_prefetch=0,
            grid=(grid_c, grid_n),
            in_specs=[
                pl.BlockSpec((B, tc2, tn), lambda c, n: (0, c, n)),
                pl.BlockSpec((1, Cp, 1), lambda c, n: (0, 0, 0)),   # resident
                pl.BlockSpec((1, Cp, 1), lambda c, n: (0, 0, 0)),   # resident
            ],
            out_specs=pl.BlockSpec((B, tc2, tn), lambda c, n: (0, c, n))),
        compiler_params=pltpu.CompilerParams(
            dimension_semantics=("parallel", "parallel"),
            vmem_limit_bytes=vmem_limit),
    )(x3, a, b)
    return out.reshape(x_shape)


# ---------------------------------------------------------------------------
# Self-test
# ---------------------------------------------------------------------------

if __name__ == "__main__":
    key = jax.random.PRNGKey(0)

    def ref_bn(x, scale, shift, eps=1e-5):
        B, C = x.shape[0], x.shape[1]
        xr = x.reshape(B, C, -1).astype(jnp.float32)
        mean = xr.mean(axis=(0, 2), keepdims=True)
        var = ((xr - mean) ** 2).mean(axis=(0, 2), keepdims=True)
        y = (xr - mean) * jax.lax.rsqrt(var + eps)
        y = scale.reshape(1, C, 1) * y + shift.reshape(1, C, 1)
        return y.reshape(x.shape).astype(x.dtype)

    k1, k2, k3, k4 = jax.random.split(key, 4)

    # Case 1: image input (B, C, H, W), tiny -> single full block.
    xa = jax.random.normal(k1, (2, 4, 16, 16), dtype=jnp.float32)
    sa = jnp.full((4,), 1.5, jnp.float32)
    ba = jnp.full((4,), 0.25, jnp.float32)
    oa = jax.block_until_ready(batch_norm(xa, sa, ba, eps=1e-5))
    assert jnp.allclose(oa, ref_bn(xa, sa, ba), atol=1e-4, rtol=1e-4)

    # Case 2: image input with a tiled channel grid (C=32 -> 4 channel blocks).
    xb = jax.random.normal(k2, (4, 32, 8, 8), dtype=jnp.float32)
    sb = jax.random.normal(k3, (32,), dtype=jnp.float32)
    bb = jax.random.normal(k4, (32,), dtype=jnp.float32)
    ob = jax.block_until_ready(batch_norm(xb, sb, bb, eps=1e-5))
    assert jnp.allclose(ob, ref_bn(xb, sb, bb), atol=1e-4, rtol=1e-4)

    # Case 3: 2-D linear input (B, C) -> lane-dense path, 2 lane blocks.
    xc = jax.random.normal(k1, (16, 256), dtype=jnp.float32)
    sc = jnp.ones((256,), jnp.float32)
    bc = jnp.zeros((256,), jnp.float32)
    oc = jax.block_until_ready(batch_norm(xc, sc, bc, eps=1e-5))
    assert jnp.allclose(oc, ref_bn(xc, sc, bc), atol=1e-4, rtol=1e-4)

    print("KERNEL_OK")
</pallas_src>

<mosaic_0001>
module attributes {stable_mosaic.version = 11 : i64} {
  func.func @_bn_single_pass_kernel(%arg0: i32, %arg1: memref<2x4x256xf32, #tpu.memory_space<vmem>>, %arg2: memref<1x4x1xf32, #tpu.memory_space<vmem>>, %arg3: memref<1x4x1xf32, #tpu.memory_space<vmem>>, %arg4: memref<2x4x256xf32, #tpu.memory_space<vmem>>) attributes {dimension_semantics = [#tpu.dimension_semantics<parallel>], iteration_bounds = array<i64: 1>, scalar_prefetch = 0 : i64, scratch_operands = 0 : i64, tpu.core_type = #tpu.core_type<tc>, window_params = [{transform_indices = @transform_0, window_bounds = array<i64: 2, 4, 256>}, {transform_indices = @transform_1, window_bounds = array<i64: 1, 4, 1>}, {transform_indices = @transform_2, window_bounds = array<i64: 1, 4, 1>}, {transform_indices = @transform_3, window_bounds = array<i64: 2, 4, 256>}]} {
    %c0 = arith.constant 0 : index
    %c0_0 = arith.constant 0 : index
    %c0_1 = arith.constant 0 : index
    %0 = vector.load %arg1[%c0, %c0_0, %c0_1] : memref<2x4x256xf32, #tpu.memory_space<vmem>>, vector<2x4x256xf32>
    %cst = arith.constant dense<0.000000e+00> : vector<2x4xf32>
    %1 = vector.multi_reduction <add>, %0, %cst [2] : vector<2x4x256xf32> to vector<2x4xf32>
    %2 = vector.shape_cast %1 : vector<2x4xf32> to vector<2x4x1xf32>
    %cst_2 = arith.constant dense<0.000000e+00> : vector<4x1xf32>
    %3 = vector.multi_reduction <add>, %2, %cst_2 [0] : vector<2x4x1xf32> to vector<4x1xf32>
    %4 = vector.shape_cast %3 : vector<4x1xf32> to vector<1x4x1xf32>
    %cst_3 = arith.constant 0.001953125 : f32
    %5 = vector.broadcast %cst_3 : f32 to vector<1x4x1xf32>
    %6 = arith.mulf %4, %5 : vector<1x4x1xf32>
    %7 = vector.broadcast %6 : vector<1x4x1xf32> to vector<2x4x256xf32>
    %8 = arith.subf %0, %7 : vector<2x4x256xf32>
    %9 = arith.mulf %8, %8 : vector<2x4x256xf32>
    %cst_4 = arith.constant dense<0.000000e+00> : vector<2x4xf32>
    %10 = vector.multi_reduction <add>, %9, %cst_4 [2] : vector<2x4x256xf32> to vector<2x4xf32>
    %11 = vector.shape_cast %10 : vector<2x4xf32> to vector<2x4x1xf32>
    %cst_5 = arith.constant dense<0.000000e+00> : vector<4x1xf32>
    %12 = vector.multi_reduction <add>, %11, %cst_5 [0] : vector<2x4x1xf32> to vector<4x1xf32>
    %13 = vector.shape_cast %12 : vector<4x1xf32> to vector<1x4x1xf32>
    %cst_6 = arith.constant 0.001953125 : f32
    %14 = vector.broadcast %cst_6 : f32 to vector<1x4x1xf32>
    %15 = arith.mulf %13, %14 : vector<1x4x1xf32>
    %cst_7 = arith.constant 9.99999974E-6 : f32
    %16 = vector.broadcast %cst_7 : f32 to vector<1x4x1xf32>
    %17 = arith.addf %15, %16 : vector<1x4x1xf32>
    %18 = math.rsqrt %17 : vector<1x4x1xf32>
    %c0_8 = arith.constant 0 : index
    %c0_9 = arith.constant 0 : index
    %c0_10 = arith.constant 0 : index
    %19 = vector.load %arg2[%c0_8, %c0_9, %c0_10] : memref<1x4x1xf32, #tpu.memory_space<vmem>>, vector<1x4x1xf32>
    %20 = arith.mulf %19, %18 : vector<1x4x1xf32>
    %c0_11 = arith.constant 0 : index
    %c0_12 = arith.constant 0 : index
    %c0_13 = arith.constant 0 : index
    %21 = vector.load %arg3[%c0_11, %c0_12, %c0_13] : memref<1x4x1xf32, #tpu.memory_space<vmem>>, vector<1x4x1xf32>
    %22 = arith.mulf %6, %20 : vector<1x4x1xf32>
    %23 = arith.subf %21, %22 : vector<1x4x1xf32>
    %c0_14 = arith.constant 0 : index
    %c0_15 = arith.constant 0 : index
    %c0_16 = arith.constant 0 : index
    %24 = vector.load %arg1[%c0_14, %c0_15, %c0_16] : memref<2x4x256xf32, #tpu.memory_space<vmem>>, vector<2x4x256xf32>
    %25 = vector.broadcast %20 : vector<1x4x1xf32> to vector<2x4x256xf32>
    %26 = arith.mulf %24, %25 : vector<2x4x256xf32>
    %27 = vector.broadcast %23 : vector<1x4x1xf32> to vector<2x4x256xf32>
    %28 = arith.addf %26, %27 : vector<2x4x256xf32>
    %c0_17 = arith.constant 0 : index
    %c0_18 = arith.constant 0 : index
    %c0_19 = arith.constant 0 : index
    %29 = vector.load %arg4[%c0_17, %c0_18, %c0_19] : memref<2x4x256xf32, #tpu.memory_space<vmem>>, vector<2x4x256xf32>
    tpu.vector_store %arg4[%c0_17, %c0_18, %c0_19], %28 {strides = array<i32>} : memref<2x4x256xf32, #tpu.memory_space<vmem>>, vector<2x4x256xf32>,
    return
  }
  func.func @transform_0(%arg0: i32) -> (i32, i32, i32) {
    %c0_i32 = arith.constant 0 : i32
    %c0_i32_0 = arith.constant 0 : i32
    %c0_i32_1 = arith.constant 0 : i32
    return %c0_i32, %arg0, %c0_i32_0 : i32, i32, i32
  }
  func.func @transform_1(%arg0: i32) -> (i32, i32, i32) {
    %c0_i32 = arith.constant 0 : i32
    %c0_i32_0 = arith.constant 0 : i32
    %c0_i32_1 = arith.constant 0 : i32
    return %c0_i32, %arg0, %c0_i32_0 : i32, i32, i32
  }
  func.func @transform_2(%arg0: i32) -> (i32, i32, i32) {
    %c0_i32 = arith.constant 0 : i32
    %c0_i32_0 = arith.constant 0 : i32
    %c0_i32_1 = arith.constant 0 : i32
    return %c0_i32, %arg0, %c0_i32_0 : i32, i32, i32
  }
  func.func @transform_3(%arg0: i32) -> (i32, i32, i32) {
    %c0_i32 = arith.constant 0 : i32
    %c0_i32_0 = arith.constant 0 : i32
    %c0_i32_1 = arith.constant 0 : i32
    return %c0_i32, %arg0, %c0_i32_0 : i32, i32, i32
  }
}

</mosaic_0001>

<llo_original>
// kernel: tpu_custom_call.1
$region0: #{tpu_custom_call.1}
  #allocation0 [shape = 'u32[]', space=smem, size = 0x4, offset = 0x4, fixed_abs, tag = 'smem constant byte address 0x4 - core index']
  #allocation1 [shape = 'u32[144,128]{1,0:T(1,128)}', space=vmem, size = 0x12000, scoped, tag = 'internal scratch']
  %s0 = inlined_call_operand.hbm [shape: f32[2,4,256], index: 0, kind: input, shape index: {}]
  %s1 = inlined_call_operand.vmem [shape: f32[1,4,1], index: 1, kind: input, shape index: {}]
  %s2 = inlined_call_operand.vmem [shape: f32[1,4,1], index: 2, kind: input, shape index: {}]
  %s3 = inlined_call_operand.hbm [shape: f32[2,4,256], index: 3, kind: output, shape index: {}]
  %s4 = sld [smem:[#allocation0]]
  $region26: #{tpu_custom_call.1} parent=0
    _
  %s6 = ssub.s32 1, %s4
  %s7 = scalar_select 0, %s6, %s4
  $region1: #{tpu_custom_call.1} parent=0
    #allocation2 [shape = 'u8[8192]{0}', space=vmem, size = 0x2000, scoped, tag = 'input window, operand 0, single buffered']
    #allocation3 [shape = 's32[1]{0}', space=sflag, size = 0x4, scoped, tag = 'scoped memory for tpu_custom_call.1']
    #allocation4 [shape = 's32[1]{0}', space=sflag, size = 0x4, scoped, tag = 'scoped memory for tpu_custom_call.1']
    #allocation5 [shape = 'u8[8192]{0}', space=vmem, size = 0x2000, scoped, tag = 'output window, operand 0, single buffered']
    %8 = vsyncpa [#allocation3], 0
    %9 = vsyncpa [#allocation4], 0
    // Predicated region
    $region2: #{tpu_custom_call.1} parent=1 // pred_check
      _
    $region3: #{tpu_custom_call.1} parent=1 // pred_check_branch
      %11 = sbr.rel (0) target = $region5
    $region4: #{tpu_custom_call.1} parent=1 // pred_region
      %s13 = ssub.s32 256, 256
      %14 = vsyncadd [#allocation3], %s13
      %s15 = sshll.u32 [#allocation2], 4
      %s16 = int_to_ptr.vmem [resolvable:$true] %s15
      %21 = dma.hbm_to_vmem [thread:$0]  %s0, 256, %s16, [#allocation3], 128, 128, 8
    $region5: #{tpu_custom_call.1} parent=1 // pred_fallthru
      _
    // Predicated region
    $region6: #{tpu_custom_call.1} parent=1 // pred_check
      _
    $region7: #{tpu_custom_call.1} parent=1 // pred_check_branch
      %23 = sbr.rel (0) target = $region9
    $region8: #{tpu_custom_call.1} parent=1 // pred_region
      _
    $region9: #{tpu_custom_call.1} parent=1 // pred_fallthru
      _
    // Predicated region
    $region10: #{tpu_custom_call.1} parent=1 // pred_check
      _
    $region11: #{tpu_custom_call.1} parent=1 // pred_check_branch
      %25 = sbr.rel (0) target = $region13
    $region12: #{tpu_custom_call.1} parent=1 // pred_region
      _
    $region13: #{tpu_custom_call.1} parent=1 // pred_fallthru
      _
    // Predicated region
    $region14: #{tpu_custom_call.1} parent=1 // pred_check
      _
    $region15: #{tpu_custom_call.1} parent=1 // pred_check_branch
      %27 = sbr.rel (0) target = $region17
    $region16: #{tpu_custom_call.1} parent=1 // pred_region
      %28 = dma.done [#allocation3], 256
    $region17: #{tpu_custom_call.1} parent=1 // pred_fallthru
      _
    %v29 = vld [vmem:[#allocation2] sm:$0xff]
    %v30 = vld [vmem:[#allocation2 + $0x8] sm:$0xff]
    %v33 = vcombine.high %v29, %v29
    %v34 = vcombine.high %v30, %v30
    %vm37 = vcmask 1043456
    %v38 = vsel %vm37, %v29, 0.0
    %v39 = vsel %vm37, %v33, 0.0
    %v40 = vadd.f32 %v38, %v39
    %41 = vadd.xlane.f32.xlu0 %v40
    %v42 = vpop.xlane.xlu0 %41
    %v43 = vsel %vm37, %v30, 0.0
    %v44 = vsel %vm37, %v34, 0.0
    %v45 = vadd.f32 %v43, %v44
    %46 = vadd.xlane.f32.xlu0 %v45
    %v47 = vpop.xlane.xlu0 %46
    %v48 = vsel %vm37, %v42, 0.0
    %v49 = vsel %vm37, %v47, 0.0
    %v50 = vadd.f32 %v48, %v49
    %v51 = vmul.f32 %v50, 0.001953125
    %v54 = vunpack.c.l.s4 839922192
    %v55 = vunpack.c.0.s8 %v54
    %v56 = vlaneseq
    %v57 = vshrl.u32 %v56, 7
    %v58 = vsub.s32 %v55, %v57
    %v59 = vrot.slane %v51, %v58
    %v61 = vsub.f32 %v29, %v59
    %v62 = vsub.f32 %v30, %v59
    %v63 = vmul.f32 %v61, %v61
    %v64 = vmul.f32 %v62, %v62
    %v67 = vcombine.high %v63, %v63
    %v68 = vcombine.high %v64, %v64
    %v71 = vsel %vm37, %v63, 0.0
    %v72 = vsel %vm37, %v67, 0.0
    %v73 = vadd.f32 %v71, %v72
    %74 = vadd.xlane.f32.xlu0 %v73
    %v75 = vpop.xlane.xlu0 %74
    %v76 = vsel %vm37, %v64, 0.0
    %v77 = vsel %vm37, %v68, 0.0
    %v78 = vadd.f32 %v76, %v77
    %79 = vadd.xlane.f32.xlu0 %v78
    %v80 = vpop.xlane.xlu0 %79
    %v81 = vsel %vm37, %v75, 0.0
    %v82 = vsel %vm37, %v80, 0.0
    %v83 = vadd.f32 %v81, %v82
    %v84 = vmul.f32 %v83, 0.001953125
    %v85 = vadd.f32 %v84, 1e-05
    %v86 = vrsqrt.pop %v85
    %v87 = vld [vmem:[%s1] sm:$0xf]
    %v88 = vmul.f32 %v87, %v86
    %v89 = vld [vmem:[%s2] sm:$0xf]
    %v90 = vmul.f32 %v51, %v88
    %v91 = vsub.f32 %v89, %v90
    %93 = vset.pattern.permute.xlu0 0
    %94 = vperm.xlu0 %93, %v88
    %v95 = vpop.permute.xlu0 %94
    %v97 = vunpack.c.l.s4 839922192
    %v98 = vunpack.c.0.s8 %v97
    %v99 = vlaneseq
    %v100 = vshrl.u32 %v99, 7
    %v101 = vsub.s32 %v98, %v100
    %v102 = vrot.slane %v95, %v101
    %v104 = vmul.f32 %v29, %v102
    %v105 = vmul.f32 %v30, %v102
    %107 = vset.pattern.permute.xlu0 0
    %108 = vperm.xlu0 %107, %v91
    %v109 = vpop.permute.xlu0 %108
    %v111 = vunpack.c.l.s4 839922192
    %v112 = vunpack.c.0.s8 %v111
    %v113 = vlaneseq
    %v114 = vshrl.u32 %v113, 7
    %v115 = vsub.s32 %v112, %v114
    %v116 = vrot.slane %v109, %v115
    %v118 = vadd.f32 %v104, %v116
    %v119 = vadd.f32 %v105, %v116
    %120 = vst [vmem:[#allocation5] sm:$0xff] %v118
    %121 = vst [vmem:[#allocation5 + $0x8] sm:$0xff] %v119
    // Predicated region
    $region18: #{tpu_custom_call.1} parent=1 // pred_check
      _
    $region19: #{tpu_custom_call.1} parent=1 // pred_check_branch
      %123 = sbr.rel (0) target = $region21
    $region20: #{tpu_custom_call.1} parent=1 // pred_region
      %s125 = ssub.s32 256, 256
      %126 = vsyncadd [#allocation4], %s125
      %s127 = sshll.u32 [#allocation5], 4
      %s128 = int_to_ptr.vmem [resolvable:$true] %s127
      %133 = dma.vmem_to_hbm [thread:$0]  %s128, 256, %s3, [#allocation4], 128, 128, 8
    $region21: #{tpu_custom_call.1} parent=1 // pred_fallthru
      _
    // Predicated region
    $region22: #{tpu_custom_call.1} parent=1 // pred_check
      _
    $region23: #{tpu_custom_call.1} parent=1 // pred_check_branch
      %135 = sbr.rel (0) target = $region25
    $region24: #{tpu_custom_call.1} parent=1 // pred_region
      %136 = dma.done [#allocation4], 256
    $region25: #{tpu_custom_call.1} parent=1 // pred_fallthru
      _
    %137 = vsyncpa [#allocation3], 1
    %138 = vsyncpa [#allocation4], 1

</llo_original>
